<compile_context>
chip_gen: v6e
topology: v6e:2x2x1
jax: 0.10.0
libtpu: 0.0.40
codegen_flags: <defaults>
</compile_context>

<pallas_src>
import functools

import jax
import jax.numpy as jnp
from jax.experimental import pallas as pl
from jax.experimental.pallas import tpu as pltpu


def _rmsnorm_kernel(x_ref, o_ref, *, eps, inv_hidden, scale_in_input_dtype):
    x = x_ref[...]
    xf = x.astype(jnp.float32)
    # Cross-lane reduce on the XLU (free slot while the kernel is HBM-bound).
    ss = jnp.sum(xf * xf, axis=-1, keepdims=True)
    # mean folded into the rsqrt argument; rsqrt runs on the EUP slot.
    inv_rms = jax.lax.rsqrt(ss * inv_hidden + eps)
    if scale_in_input_dtype:
        # 16-bit float inputs on v6e/v7x: scale in the input dtype so the fp32
        # copy `xf` is dead after the reduce -> ~half the fp32 scratch.
        o_ref[...] = (x * inv_rms.astype(x.dtype)).astype(o_ref.dtype)
    else:
        o_ref[...] = (xf * inv_rms).astype(o_ref.dtype)


def _sublane_multiple(dtype) -> int:
    # Sublane packing: 8 rows per vreg for 32-bit, 16 for 16-bit, 32 for 8-bit.
    itemsize = jnp.dtype(dtype).itemsize
    return {4: 8, 2: 16, 1: 32}.get(itemsize, 8)


def _round_up(n: int, m: int) -> int:
    return ((n + m - 1) // m) * m


def _cdiv(a: int, b: int) -> int:
    return (a + b - 1) // b


def _tpu_generation_params():
    """Returns (working_set_budget_bytes, vmem_limit_bytes, min_grid_steps, has_bf16_valu).

    working_set_budget covers: double-buffered in + out tiles PLUS the in-kernel
    fp32 temporaries, i.e. the true per-step VMEM footprint.
    """
    vmem_cap = None
    try:
        vmem_cap = int(pltpu.get_tpu_info().vmem_capacity_bytes)
    except Exception:  # interpret mode / older jax — fall back to device_kind
        vmem_cap = None
    kind = ""
    try:
        kind = jax.devices()[0].device_kind.lower()
    except Exception:
        pass
    # v5e and older have no bf16 VALU -> keep the all-fp32 scale path there.
    has_bf16_valu = not any(tag in kind for tag in ("v2", "v3", "v4", "v5"))
    small_vmem = (vmem_cap is not None and vmem_cap < 96 * 1024 * 1024) or ("7" in kind)
    if small_vmem:
        # v7x-class: 64 MiB VMEM per TC, 2 TCs/chip, ~3.2 TB/s HBM.
        # ~2 MiB input tiles; cap scoped VMEM at 48 MiB; require >= 8 grid steps
        # so both TensorCores are fed and DMA has iterations to hide behind.
        return 12 * 1024 * 1024, 48 * 1024 * 1024, 8, has_bf16_valu
    # v5e/v6e-class: 128 MiB physical VMEM, 1 TC.  Push to ~4 MiB input tiles
    # (per-grid-step overhead ~0.35 us amortized further) with a 64 MiB limit.
    return 24 * 1024 * 1024, 64 * 1024 * 1024, 4, has_bf16_valu


def rmsnorm(x, eps: float = 1e-8, rows_per_block: int | None = None):
    """RMSNorm over the last axis: x / sqrt(mean(x**2, -1) + eps)."""
    orig_shape = x.shape
    hidden = orig_shape[-1]
    x2d = x.reshape(-1, hidden)
    n_rows = x2d.shape[0]

    itemsize = jnp.dtype(x.dtype).itemsize
    mult = _sublane_multiple(x.dtype)

    working_budget, vmem_limit, min_steps, has_bf16_valu = _tpu_generation_params()

    # Low-precision final scale only for 16-bit float inputs on chips with a
    # bf16 VALU.  Sum-of-squares and rsqrt stay fp32 on every generation.
    scale_in_input_dtype = bool(
        has_bf16_valu
        and jnp.issubdtype(x.dtype, jnp.floating)
        and itemsize == 2
    )

    # --- per-row VMEM accounting (includes in-kernel fp32 temporaries) ---
    in_row = hidden * itemsize
    out_row = hidden * itemsize
    f32_row = hidden * 4
    if itemsize == 4:
        temp_row = f32_row          # fp32 product before the store
    elif scale_in_input_dtype:
        temp_row = f32_row          # fp32 copy dies right after the reduce
    else:
        temp_row = 2 * f32_row      # fp32 copy (live across reduce) + fp32 product
    working_row = 2 * in_row + 2 * out_row + temp_row  # double-buffered in/out + temps

    if rows_per_block is None:
        rpb = max(mult, (working_budget // working_row) // mult * mult)
        # Keep enough grid steps for megacore sharding (v7x: 2 TCs) + pipelining.
        rpb = min(rpb, max(mult, _round_up(_cdiv(n_rows, min_steps), mult)))
    else:
        rpb = max(mult, _round_up(rows_per_block, mult))
    # Never allocate a tile larger than the (padded) problem.
    rpb = min(rpb, _round_up(n_rows, mult))
    rpb = max(mult, rpb)

    grid = (pl.cdiv(n_rows, rpb),)  # ragged last block handled by Pallas masking

    kernel = functools.partial(
        _rmsnorm_kernel,
        eps=float(eps),
        inv_hidden=float(1.0 / hidden),
        scale_in_input_dtype=scale_in_input_dtype,
    )

    out = pl.pallas_call(
        kernel,
        out_shape=jax.ShapeDtypeStruct((n_rows, hidden), x.dtype),
        grid_spec=pltpu.PrefetchScalarGridSpec(
            num_scalar_prefetch=0,
            grid=grid,
            in_specs=[pl.BlockSpec((rpb, hidden), lambda i: (i, 0))],
            out_specs=pl.BlockSpec((rpb, hidden), lambda i: (i, 0)),
        ),
        compiler_params=pltpu.CompilerParams(
            # Row grid is embarrassingly parallel -> shard across TensorCores
            # (2 TCs/chip on v7x); a no-op on single-TC v5e/v6e.
            dimension_semantics=("parallel",),
            # Generation-aware scoped-VMEM cap (64 MiB on v5e/v6e, 48 MiB on
            # v7x); tiles are sized so the full working set fits comfortably.
            vmem_limit_bytes=vmem_limit,
        ),
    )(x2d)

    return out.reshape(orig_shape)


def rmsnorm_ref(x, eps: float = 1e-8):
    x32 = x.astype(jnp.float32)
    rms = jnp.sqrt(jnp.mean(x32 * x32, axis=-1, keepdims=True) + eps)
    return (x32 / rms).astype(x.dtype)


if __name__ == "__main__":
    key = jax.random.PRNGKey(0)
    batch, seq, hidden = 2, 8, 32
    x = jax.random.normal(key, (batch, seq, hidden), dtype=jnp.float32)

    out = jax.block_until_ready(rmsnorm(x))
    ref = rmsnorm_ref(x)
    assert out.shape == x.shape and out.dtype == x.dtype
    assert jnp.allclose(out, ref, atol=1e-5, rtol=1e-5), "f32 mismatch vs reference"

    # Ragged-row case (n_rows not a multiple of the block) -> masked last block.
    x2 = jax.random.normal(jax.random.PRNGKey(1), (3, 5, hidden), dtype=jnp.float32)
    out2 = jax.block_until_ready(rmsnorm(x2, rows_per_block=8))
    assert jnp.allclose(out2, rmsnorm_ref(x2), atol=1e-5, rtol=1e-5), "ragged mismatch"

    # bf16 path: exercises the reduced-fp32-scratch scale on v6e/v7x
    # (all-fp32 scale on v5e); error is below bf16 output rounding.
    xb = jax.random.normal(jax.random.PRNGKey(2), (4, 8, 128), dtype=jnp.bfloat16)
    out3 = jax.block_until_ready(rmsnorm(xb))
    ref3 = rmsnorm_ref(xb)
    assert out3.shape == xb.shape and out3.dtype == xb.dtype
    assert jnp.allclose(out3.astype(jnp.float32), ref3.astype(jnp.float32),
                        atol=3e-2, rtol=3e-2), "bf16 mismatch vs reference"

    print("KERNEL_OK")
</pallas_src>

<mosaic_0001>
module attributes {stable_mosaic.version = 11 : i64} {
  func.func @_rmsnorm_kernel(%arg0: i32, %arg1: memref<8x32xf32, #tpu.memory_space<vmem>>, %arg2: memref<8x32xf32, #tpu.memory_space<vmem>>) attributes {dimension_semantics = [#tpu.dimension_semantics<parallel>], iteration_bounds = array<i64: 2>, scalar_prefetch = 0 : i64, scratch_operands = 0 : i64, tpu.core_type = #tpu.core_type<tc>, window_params = [{transform_indices = @transform_0, window_bounds = array<i64: 8, 32>}, {transform_indices = @transform_1, window_bounds = array<i64: 8, 32>}]} {
    %c0 = arith.constant 0 : index
    %c0_0 = arith.constant 0 : index
    %0 = vector.load %arg1[%c0, %c0_0] : memref<8x32xf32, #tpu.memory_space<vmem>>, vector<8x32xf32>
    %1 = arith.mulf %0, %0 : vector<8x32xf32>
    %cst = arith.constant dense<0.000000e+00> : vector<8xf32>
    %2 = vector.multi_reduction <add>, %1, %cst [1] : vector<8x32xf32> to vector<8xf32>
    %3 = vector.shape_cast %2 : vector<8xf32> to vector<8x1xf32>
    %cst_1 = arith.constant 3.125000e-02 : f32
    %4 = vector.broadcast %cst_1 : f32 to vector<8x1xf32>
    %5 = arith.mulf %3, %4 : vector<8x1xf32>
    %cst_2 = arith.constant 9.99999993E-9 : f32
    %6 = vector.broadcast %cst_2 : f32 to vector<8x1xf32>
    %7 = arith.addf %5, %6 : vector<8x1xf32>
    %8 = math.rsqrt %7 : vector<8x1xf32>
    %9 = vector.broadcast %8 : vector<8x1xf32> to vector<8x32xf32>
    %10 = arith.mulf %0, %9 : vector<8x32xf32>
    %c0_3 = arith.constant 0 : index
    %c0_4 = arith.constant 0 : index
    %11 = vector.load %arg2[%c0_3, %c0_4] : memref<8x32xf32, #tpu.memory_space<vmem>>, vector<8x32xf32>
    tpu.vector_store %arg2[%c0_3, %c0_4], %10 {strides = array<i32>} : memref<8x32xf32, #tpu.memory_space<vmem>>, vector<8x32xf32>,
    return
  }
  func.func @transform_0(%arg0: i32) -> (i32, i32) {
    %c0_i32 = arith.constant 0 : i32
    %c0_i32_0 = arith.constant 0 : i32
    return %arg0, %c0_i32 : i32, i32
  }
  func.func @transform_1(%arg0: i32) -> (i32, i32) {
    %c0_i32 = arith.constant 0 : i32
    %c0_i32_0 = arith.constant 0 : i32
    return %arg0, %c0_i32 : i32, i32
  }
}

</mosaic_0001>

<llo_original>
// kernel: tpu_custom_call.1
$region0: #{tpu_custom_call.1}
  #allocation0 [shape = 'u32[]', space=smem, size = 0x4, offset = 0x4, fixed_abs, tag = 'smem constant byte address 0x4 - core index']
  #allocation1 [shape = 'u32[144,128]{1,0:T(1,128)}', space=vmem, size = 0x12000, scoped, tag = 'internal scratch']
  %s0 = inlined_call_operand.hbm [shape: f32[16,32], index: 0, kind: input, shape index: {}]
  %s1 = inlined_call_operand.hbm [shape: f32[16,32], index: 1, kind: output, shape index: {}]
  %s2 = sld [smem:[#allocation0]]
  $region41: #{tpu_custom_call.1} parent=0
    _
  %s4 = ssub.s32 1, %s2
  %s5 = scalar_select 0, %s4, %s2
  $region1: #{tpu_custom_call.1} parent=0
    #allocation2 [shape = 'u8[8192]{0}', space=vmem, size = 0x2000, scoped, tag = 'input window, operand 0']
    #allocation3 [shape = 's32[2]{0}', space=sflag, size = 0x8, scoped, tag = 'scoped memory for tpu_custom_call.1']
    #allocation4 [shape = 's32[2]{0}', space=sflag, size = 0x8, scoped, tag = 'scoped memory for tpu_custom_call.1']
    #allocation5 [shape = 'u8[8192]{0}', space=vmem, size = 0x2000, scoped, tag = 'output window, operand 0']
    %6 = vsyncpa [#allocation3], 0
    %s7 = scalar_lea.sflag [#allocation3], 1
    %8 = vsyncpa %s7, 0
    %9 = vsyncpa [#allocation4], 0
    %s10 = scalar_lea.sflag [#allocation4], 1
    %11 = vsyncpa %s10, 0
    loop: start=0, step=1, limit=4
    $region2: #{tpu_custom_call.1} parent=1 // loop_pre_header
      _
    $region3: #{tpu_custom_call.1} parent=1 // loop_header
      %s13 = sphi 0, %s17
      %p14 = scmp.ge.s32.totalorder %s13, 4
      %s23 = sphi 0, %s25
      %s26 = sphi 0, %s23
      %s27 = sphi 0, %s26
      %s43 = sphi 0, %s27
      %s49 = sphi 0, %s51
      %s52 = sphi 0, %s49
      %s53 = sphi 0, %s52
      %s69 = sphi 0, %s53
    $region4: #{tpu_custom_call.1} parent=1 // loop_header_branch
      %16 = sbr.rel (%p14) target = $region8
    $region5: #{tpu_custom_call.1} parent=1 // loop_body
      %s18 = ssub.s32 %s13, 1
      %s19 = ssub.s32 %s13, 2
      %s20 = sadd.s32 %s13, 1
      %s21 = ssub.s32 %s13, %s20
      %p22 = scmp.eq.s32.totalorder %s21, 0
      %s24 = sadd.s32 %s23, 1
      %s25 = scalar_select %p22, %s23, %s24
      %p28 = pneg %p22
      %p29 = scmp.eq.s32.totalorder %s13, 1
      %p30 = por %p28, %p29
      %p31 = scmp.ne.s32.totalorder %s23, %s26
      %p32 = scmp.eq.s32.totalorder %s13, 0
      %p33 = por %p31, %p32
      %p34 = scmp.ne.s32.totalorder %s23, %s26
      %p35 = scmp.eq.s32.totalorder %s18, 1
      %p36 = por %p34, %p35
      %p37 = scmp.ne.s32.totalorder %s26, %s27
      %p38 = scmp.eq.s32.totalorder %s18, 0
      %p39 = por %p37, %p38
      %p40 = scmp.ne.s32.totalorder %s26, %s27
      %p41 = scmp.eq.s32.totalorder %s19, 1
      %p42 = por %p40, %p41
      %p44 = scmp.ne.s32.totalorder %s27, %s43
      %p45 = scmp.eq.s32.totalorder %s19, 0
      %p46 = por %p44, %p45
      %s47 = ssub.s32 %s13, %s20
      %p48 = scmp.eq.s32.totalorder %s47, 0
      %s50 = sadd.s32 %s49, 1
      %s51 = scalar_select %p48, %s49, %s50
      %p54 = pneg %p48
      %p55 = scmp.eq.s32.totalorder %s13, 1
      %p56 = por %p54, %p55
      %p57 = scmp.ne.s32.totalorder %s49, %s52
      %p58 = scmp.eq.s32.totalorder %s13, 0
      %p59 = por %p57, %p58
      %p60 = scmp.ne.s32.totalorder %s49, %s52
      %p61 = scmp.eq.s32.totalorder %s18, 1
      %p62 = por %p60, %p61
      %p63 = scmp.ne.s32.totalorder %s52, %s53
      %p64 = scmp.eq.s32.totalorder %s18, 0
      %p65 = por %p63, %p64
      %p66 = scmp.ne.s32.totalorder %s52, %s53
      %p67 = scmp.eq.s32.totalorder %s19, 1
      %p68 = por %p66, %p67
      %p70 = scmp.ne.s32.totalorder %s53, %s69
      %p71 = scmp.eq.s32.totalorder %s19, 0
      %p72 = por %p70, %p71
      %p73 = scmp.le.s32.totalorder 1, %s13
      %p74 = scmp.lt.s32.totalorder %s13, 3
      %p75 = pnand %p73, %p74
      %p76 = pneg %p75
      // Predicated region
      $region9: #{tpu_custom_call.1} parent=5 // pred_check
        _
      $region10: #{tpu_custom_call.1} parent=5 // pred_check_branch
        %78 = sbr.rel (%p75) target = $region12
      $region11: #{tpu_custom_call.1} parent=5 // pred_region
        %s79 = ssub.s32 %s13, 1
      $region12: #{tpu_custom_call.1} parent=5 // pred_fallthru
        _
      %p80 = scmp.lt.s32.totalorder %s13, 2
      // Predicated region
      $region13: #{tpu_custom_call.1} parent=5 // pred_check
        %p81 = pneg %p80
      $region14: #{tpu_custom_call.1} parent=5 // pred_check_branch
        %83 = sbr.rel (%p81) target = $region16
      $region15: #{tpu_custom_call.1} parent=5 // pred_region
        // Predicated region
        $region17: #{tpu_custom_call.1} parent=15 // pred_check
          %p84 = pneg %p33
        $region18: #{tpu_custom_call.1} parent=15 // pred_check_branch
          %86 = sbr.rel (%p84) target = $region20
        $region19: #{tpu_custom_call.1} parent=15 // pred_region
          %s87 = sand.u32 %s23, 1
          %s88 = scalar_lea.sflag [#allocation3], %s87
          %s89 = sand.u32 %s23, 1
          %s90 = smul.addr %s89, 8
          %s91 = scalar_lea.vmem [#allocation2], %s90
          %s93 = ssub.s32 128, 128
          %94 = vsyncadd %s88, %s93
          %s95 = smul.addr %s13, 128
          %s96 = scalar_lea.hbm %s0, %s95
          %s98 = sshll.u32 %s91, 4
          %s99 = int_to_ptr.vmem [resolvable:$true] %s98
          %101 = dma.hbm_to_vmem [thread:$0]  %s96, 128, %s99, %s88
        $region20: #{tpu_custom_call.1} parent=15 // pred_fallthru
          _
      $region16: #{tpu_custom_call.1} parent=5 // pred_fallthru
        _
      %p102 = scmp.le.s32.totalorder 1, %s13
      %p103 = scmp.lt.s32.totalorder %s13, 3
      %p104 = pnand %p102, %p103
      %p105 = pneg %p104
      // Predicated region
      $region21: #{tpu_custom_call.1} parent=5 // pred_check
        _
      $region22: #{tpu_custom_call.1} parent=5 // pred_check_branch
        %107 = sbr.rel (%p104) target = $region24
      $region23: #{tpu_custom_call.1} parent=5 // pred_region
        %s108 = ssub.s32 %s13, 1
        %s109 = sand.u32 %s26, 1
        %s110 = scalar_lea.sflag [#allocation3], %s109
        %s111 = sand.u32 %s26, 1
        %s112 = smul.addr %s111, 8
        %s113 = scalar_lea.vmem [#allocation2], %s112
        // Predicated region
        $region25: #{tpu_custom_call.1} parent=23 // pred_check
          %p114 = pneg %p39
        $region26: #{tpu_custom_call.1} parent=23 // pred_check_branch
          %116 = sbr.rel (%p114) target = $region28
        $region27: #{tpu_custom_call.1} parent=23 // pred_region
          %117 = dma.done %s110, 128
        $region28: #{tpu_custom_call.1} parent=23 // pred_fallthru
          _
        %s118 = sand.u32 %s26, 1
        %s119 = scalar_lea.sflag [#allocation3], %s118
        %s120 = sand.u32 %s26, 1
        %s121 = smul.addr %s120, 8
        %s122 = scalar_lea.vmem [#allocation2], %s121
        %p123 = pneg %p39
        %p124 = pneg %p36
        %p125 = pneg %p65
        %p126 = pneg %p62
        %s127 = sand.u32 %s52, 1
        %s128 = scalar_lea.sflag [#allocation4], %s127
        %s129 = sand.u32 %s52, 1
        %s130 = smul.addr %s129, 8
        %s131 = scalar_lea.vmem [#allocation5], %s130
        %v132 = vld [vmem:[%s113] sm:$0xff]
        %v133 = vmul.f32 %v132, %v132
        %vm134 = vcmask 261120
        %v135 = vsel %vm134, %v133, 0.0
        %136 = vadd.xlane.f32.xlu0 %v135
        %v137 = vpop.xlane.xlu0 %136
        %v138 = vmul.f32 %v137, 0.03125
        %v139 = vadd.f32 %v138, 1e-08
        %v140 = vrsqrt.pop %v139
        %v141 = vmul.f32 %v132, %v140
        %142 = vst.msk [vmem:[%s131] sm:$0xff] %vm134, %v141
        %s143 = sand.u32 %s52, 1
        %s144 = scalar_lea.sflag [#allocation4], %s143
        %s145 = sand.u32 %s52, 1
        %s146 = smul.addr %s145, 8
        %s147 = scalar_lea.vmem [#allocation5], %s146
        // Predicated region
        $region29: #{tpu_custom_call.1} parent=23 // pred_check
          %p148 = pneg %p62
        $region30: #{tpu_custom_call.1} parent=23 // pred_check_branch
          %150 = sbr.rel (%p148) target = $region32
        $region31: #{tpu_custom_call.1} parent=23 // pred_region
          %s152 = ssub.s32 128, 128
          %153 = vsyncadd %s144, %s152
          %s154 = smul.addr %s18, 128
          %s155 = scalar_lea.hbm %s1, %s154
          %s157 = sshll.u32 %s147, 4
          %s158 = int_to_ptr.vmem [resolvable:$true] %s157
          %160 = dma.vmem_to_hbm [thread:$0]  %s158, 128, %s155, %s144
        $region32: #{tpu_custom_call.1} parent=23 // pred_fallthru
          _
      $region24: #{tpu_custom_call.1} parent=5 // pred_fallthru
        _
      %p161 = scmp.le.s32.totalorder 2, %s13
      // Predicated region
      $region33: #{tpu_custom_call.1} parent=5 // pred_check
        %p162 = pneg %p161
      $region34: #{tpu_custom_call.1} parent=5 // pred_check_branch
        %164 = sbr.rel (%p162) target = $region36
      $region35: #{tpu_custom_call.1} parent=5 // pred_region
        %s165 = ssub.s32 %s13, 2
        // Predicated region
        $region37: #{tpu_custom_call.1} parent=35 // pred_check
          %p166 = pneg %p68
        $region38: #{tpu_custom_call.1} parent=35 // pred_check_branch
          %168 = sbr.rel (%p166) target = $region40
        $region39: #{tpu_custom_call.1} parent=35 // pred_region
          %s169 = sand.u32 %s53, 1
          %s170 = scalar_lea.sflag [#allocation4], %s169
          %s171 = sand.u32 %s53, 1
          %s172 = smul.addr %s171, 8
          %s173 = scalar_lea.vmem [#allocation5], %s172
          %174 = dma.done %s170, 128
        $region40: #{tpu_custom_call.1} parent=35 // pred_fallthru
          _
      $region36: #{tpu_custom_call.1} parent=5 // pred_fallthru
        _
    $region6: #{tpu_custom_call.1} parent=1 // loop_footer
      %s17 = sadd.s32 1, %s13
    $region7: #{tpu_custom_call.1} parent=1 // loop_footer_branch
      %12 = sbr.rel target = $region3
    $region8: #{tpu_custom_call.1} parent=1 // loop_exit
      _
    %175 = vsyncpa [#allocation3], 1
    %s176 = scalar_lea.sflag [#allocation3], 1
    %177 = vsyncpa %s176, 1
    %178 = vsyncpa [#allocation4], 1
    %s179 = scalar_lea.sflag [#allocation4], 1
    %180 = vsyncpa %s179, 1

</llo_original>
